<compile_context>
chip_gen: v7x
topology: tpu7x:2x2x1
jax: 0.10.0
libtpu: 0.0.40
codegen_flags: <defaults>
</compile_context>

<pallas_src>
import functools

import jax
import jax.numpy as jnp
from jax.experimental import pallas as pl
from jax.experimental.pallas import tpu as pltpu


def _round_up(n, m):
    return ((n + m - 1) // m) * m


def mlp_kernel(x_ref, w1_ref, b1_ref, w2_ref, b2_ref, o_ref):
    # x_ref : (tb, d_in)          f32  (cast to bf16 in-kernel, fused)
    # w1_ref: (d_in, d_hid_p)     bf16 (transposed + lane-padded nn.Linear weight)
    # b1_ref: (1, d_hid_p)        f32
    # w2_ref: (d_hid_p, d_out_p)  bf16
    # b2_ref: (1, d_out_p)        f32
    # o_ref : (tb, d_out_p) block over a (B, d_out) array (lane store is masked)
    x = x_ref[...].astype(jnp.bfloat16)                  # VPU cast, hides under DMA
    h = jnp.dot(x, w1_ref[...], preferred_element_type=jnp.float32)
    h = jnp.maximum(h + b1_ref[...], 0.0)                # dropout(eval)=id, ReLU in f32
    out = jnp.dot(h.astype(jnp.bfloat16), w2_ref[...],
                  preferred_element_type=jnp.float32)
    o_ref[...] = (out + b2_ref[...]).astype(o_ref.dtype)


def prepare_params(w1, b1, w2, b2, lane=128):
    """One-time parameter prep: transpose to (in, out) layout, zero-pad the
    lane (output-feature) dims to multiples of 128, cast weights to bf16.
    Call once at init, NOT per forward call."""
    d_hid, d_in = w1.shape
    d_out = w2.shape[0]
    d_hid_p = _round_up(d_hid, lane)
    d_out_p = _round_up(d_out, lane)

    w1_t = jnp.zeros((d_in, d_hid_p), jnp.bfloat16)
    w1_t = w1_t.at[:, :d_hid].set(
        jnp.asarray(w1, jnp.float32).T.astype(jnp.bfloat16))
    b1_p = jnp.zeros((1, d_hid_p), jnp.float32)
    b1_p = b1_p.at[0, :d_hid].set(jnp.asarray(b1, jnp.float32))

    w2_t = jnp.zeros((d_hid_p, d_out_p), jnp.bfloat16)
    w2_t = w2_t.at[:d_hid, :d_out].set(
        jnp.asarray(w2, jnp.float32).T.astype(jnp.bfloat16))
    b2_p = jnp.zeros((1, d_out_p), jnp.float32)
    b2_p = b2_p.at[0, :d_out].set(jnp.asarray(b2, jnp.float32))

    return {"w1_t": w1_t, "b1": b1_p, "w2_t": w2_t, "b2": b2_p, "d_out": d_out}


def _choose_batch_tile(B):
    """Batch tile: multiple of 16 (bf16 sublane tile), capped at 512
    (mem-bound sweet spot), and >= 2 grid steps once B >= 32 so the 'parallel'
    batch axis can actually shard across v7x's two TensorCores."""
    tb = min(512, _round_up(max(B, 1), 16))
    if B >= 32:
        tb = min(tb, _round_up((B + 1) // 2, 16))
    return tb


@functools.partial(jax.jit, static_argnums=(5,))
def _mlp_forward(x_nchw, w1_t, b1, w2_t, b2, d_out):
    B = x_nchw.shape[0]
    d_in = x_nchw.shape[1] * x_nchw.shape[-2] * x_nchw.shape[-1]
    d_hid_p = w1_t.shape[1]
    d_out_p = w2_t.shape[1]

    # Flatten (matches x.view(-1, C*H*W)); stays f32 — the bf16 cast is fused
    # into the kernel, and batch padding is handled by masked partial blocks.
    x2d = x_nchw.reshape(B, d_in)

    tb = _choose_batch_tile(B)
    grid = (pl.cdiv(B, tb),)

    # Derive the scoped-VMEM limit from actual tile bytes (double-buffered x
    # and out tiles, resident weights x2 buffers, f32 intermediates), with 2x
    # headroom, clamped to [32 MiB, 60 MiB] (< v7x's 64 MiB physical VMEM).
    x_tile_b = tb * d_in * 4
    out_tile_b = tb * d_out_p * 4
    weights_b = (d_in * d_hid_p + d_hid_p * d_out_p) * 2 + (d_hid_p + d_out_p) * 4
    interm_b = tb * (d_hid_p + d_out_p) * 4
    vmem_need = 2 * x_tile_b + 2 * out_tile_b + 2 * weights_b + interm_b
    vmem_limit = int(min(60 * 2**20, max(2 * vmem_need, 32 * 2**20)))

    out = pl.pallas_call(
        mlp_kernel,
        out_shape=jax.ShapeDtypeStruct((B, d_out), jnp.float32),
        grid=grid,
        in_specs=[
            pl.BlockSpec((tb, d_in), lambda i: (i, 0)),          # batch-tiled, f32
            pl.BlockSpec((d_in, d_hid_p), lambda i: (0, 0)),     # VMEM-resident
            pl.BlockSpec((1, d_hid_p), lambda i: (0, 0)),
            pl.BlockSpec((d_hid_p, d_out_p), lambda i: (0, 0)),
            pl.BlockSpec((1, d_out_p), lambda i: (0, 0)),
        ],
        # Block is 128 lanes wide; stores beyond d_out (and beyond row B) are
        # masked, so no wrapper-side slice / padded writeback is needed.
        out_specs=pl.BlockSpec((tb, d_out_p), lambda i: (i, 0)),
        compiler_params=pltpu.CompilerParams(
            # Batch axis is embarrassingly parallel; with tb chosen so the grid
            # has >=2 steps for B>=32, this shards across v7x's 2 TensorCores.
            dimension_semantics=("parallel",),
            vmem_limit_bytes=vmem_limit,
        ),
    )(x2d, w1_t, b1, w2_t, b2)

    return out


def mlp_forward(x_nchw, params):
    """x_nchw: (B, C, H, W). params: output of prepare_params (called once)."""
    return _mlp_forward(x_nchw, params["w1_t"], params["b1"],
                        params["w2_t"], params["b2"], params["d_out"])


if __name__ == "__main__":
    # Small shapes consistent with the forward: NCHW input flattened to C*H*W.
    B, C, H, W = 2, 4, 16, 16
    dim_in = C * H * W          # 1024
    dim_hidden = 32
    dim_out = 10

    key = jax.random.PRNGKey(0)
    kx, kw1, kb1, kw2, kb2 = jax.random.split(key, 5)

    x = jax.random.normal(kx, (B, C, H, W), dtype=jnp.float32)

    # PyTorch nn.Linear param shapes: (out_features, in_features)
    bound1 = 1.0 / (dim_in ** 0.5)
    w1 = jax.random.uniform(kw1, (dim_hidden, dim_in), jnp.float32, -bound1, bound1)
    b1 = jax.random.uniform(kb1, (dim_hidden,), jnp.float32, -bound1, bound1)
    bound2 = 1.0 / (dim_hidden ** 0.5)
    w2 = jax.random.uniform(kw2, (dim_out, dim_hidden), jnp.float32, -bound2, bound2)
    b2 = jax.random.uniform(kb2, (dim_out,), jnp.float32, -bound2, bound2)

    # One-time parameter prep (hoisted out of the per-call path).
    params = prepare_params(w1, b1, w2, b2)

    out = mlp_forward(x, params)
    out = jax.block_until_ready(out)
    assert out.shape == (B, dim_out)

    # Pure-JAX reference with the same bf16-operand / f32-accumulate semantics.
    x2d = x.reshape(B, dim_in)
    ref_h = jnp.dot(x2d.astype(jnp.bfloat16), w1.T.astype(jnp.bfloat16),
                    preferred_element_type=jnp.float32) + b1
    ref_h = jnp.maximum(ref_h, 0.0)
    ref = jnp.dot(ref_h.astype(jnp.bfloat16), w2.T.astype(jnp.bfloat16),
                  preferred_element_type=jnp.float32) + b2
    assert jnp.allclose(out, ref, atol=1e-3, rtol=1e-3), "mismatch vs JAX reference"

    # Looser sanity check against the full-f32 math.
    ref_f32 = jnp.maximum(x2d @ w1.T + b1, 0.0) @ w2.T + b2
    assert jnp.allclose(out, ref_f32, atol=5e-2, rtol=5e-2), "mismatch vs f32 reference"

    print("KERNEL_OK")
</pallas_src>

<mosaic_0001>
module attributes {stable_mosaic.version = 11 : i64} {
  func.func @mlp_kernel(%arg0: i32, %arg1: memref<16x1024xf32, #tpu.memory_space<vmem>>, %arg2: memref<1024x128xbf16, #tpu.memory_space<vmem>>, %arg3: memref<1x128xf32, #tpu.memory_space<vmem>>, %arg4: memref<128x128xbf16, #tpu.memory_space<vmem>>, %arg5: memref<1x128xf32, #tpu.memory_space<vmem>>, %arg6: memref<16x128xf32, #tpu.memory_space<vmem>>) attributes {dimension_semantics = [#tpu.dimension_semantics<parallel>], iteration_bounds = array<i64: 1>, scalar_prefetch = 0 : i64, scratch_operands = 0 : i64, tpu.core_type = #tpu.core_type<tc>, window_params = [{transform_indices = @transform_0, window_bounds = array<i64: 16, 1024>}, {pipeline_mode = #tpu.pipeline_mode<synchronous>, transform_indices = @transform_1, window_bounds = array<i64: 1024, 128>}, {pipeline_mode = #tpu.pipeline_mode<synchronous>, transform_indices = @transform_2, window_bounds = array<i64: 1, 128>}, {pipeline_mode = #tpu.pipeline_mode<synchronous>, transform_indices = @transform_3, window_bounds = array<i64: 128, 128>}, {pipeline_mode = #tpu.pipeline_mode<synchronous>, transform_indices = @transform_4, window_bounds = array<i64: 1, 128>}, {transform_indices = @transform_5, window_bounds = array<i64: 16, 128>}]} {
    %c0 = arith.constant 0 : index
    %c0_0 = arith.constant 0 : index
    %0 = vector.load %arg1[%c0, %c0_0] : memref<16x1024xf32, #tpu.memory_space<vmem>>, vector<16x1024xf32>
    %1 = arith.truncf %0 : vector<16x1024xf32> to vector<16x1024xbf16>
    %c0_1 = arith.constant 0 : index
    %c0_2 = arith.constant 0 : index
    %2 = vector.load %arg2[%c0_1, %c0_2] : memref<1024x128xbf16, #tpu.memory_space<vmem>>, vector<1024x128xbf16>
    %cst = arith.constant dense<0.000000e+00> : vector<16x128xf32>
    %3 = tpu.matmul %1, %2, %cst {dimension_numbers = #tpu.dot_dimension_numbers<[1], [0], [0], [1], [0, 0, 1, 1], [], []>} : vector<16x1024xbf16>, vector<1024x128xbf16>, vector<16x128xf32> -> vector<16x128xf32>
    %c0_3 = arith.constant 0 : index
    %c0_4 = arith.constant 0 : index
    %4 = vector.load %arg3[%c0_3, %c0_4] : memref<1x128xf32, #tpu.memory_space<vmem>>, vector<1x128xf32>
    %5 = vector.broadcast %4 : vector<1x128xf32> to vector<16x128xf32>
    %6 = arith.addf %3, %5 : vector<16x128xf32>
    %cst_5 = arith.constant 0.000000e+00 : f32
    %7 = vector.broadcast %cst_5 : f32 to vector<16x128xf32>
    %8 = arith.maximumf %6, %7 : vector<16x128xf32>
    %9 = arith.truncf %8 : vector<16x128xf32> to vector<16x128xbf16>
    %c0_6 = arith.constant 0 : index
    %c0_7 = arith.constant 0 : index
    %10 = vector.load %arg4[%c0_6, %c0_7] : memref<128x128xbf16, #tpu.memory_space<vmem>>, vector<128x128xbf16>
    %cst_8 = arith.constant dense<0.000000e+00> : vector<16x128xf32>
    %11 = tpu.matmul %9, %10, %cst_8 {dimension_numbers = #tpu.dot_dimension_numbers<[1], [0], [0], [1], [0, 0, 1, 1], [], []>} : vector<16x128xbf16>, vector<128x128xbf16>, vector<16x128xf32> -> vector<16x128xf32>
    %c0_9 = arith.constant 0 : index
    %c0_10 = arith.constant 0 : index
    %12 = vector.load %arg5[%c0_9, %c0_10] : memref<1x128xf32, #tpu.memory_space<vmem>>, vector<1x128xf32>
    %13 = vector.broadcast %12 : vector<1x128xf32> to vector<16x128xf32>
    %14 = arith.addf %11, %13 : vector<16x128xf32>
    %c0_11 = arith.constant 0 : index
    %c0_12 = arith.constant 0 : index
    %15 = vector.load %arg6[%c0_11, %c0_12] : memref<16x128xf32, #tpu.memory_space<vmem>>, vector<16x128xf32>
    tpu.vector_store %arg6[%c0_11, %c0_12], %14 {strides = array<i32>} : memref<16x128xf32, #tpu.memory_space<vmem>>, vector<16x128xf32>,
    return
  }
  func.func @transform_0(%arg0: i32) -> (i32, i32) {
    %c0_i32 = arith.constant 0 : i32
    %c0_i32_0 = arith.constant 0 : i32
    return %arg0, %c0_i32 : i32, i32
  }
  func.func @transform_1(%arg0: i32) -> (i32, i32) {
    %c0_i32 = arith.constant 0 : i32
    %c0_i32_0 = arith.constant 0 : i32
    %c0_i32_1 = arith.constant 0 : i32
    return %c0_i32, %c0_i32_0 : i32, i32
  }
  func.func @transform_2(%arg0: i32) -> (i32, i32) {
    %c0_i32 = arith.constant 0 : i32
    %c0_i32_0 = arith.constant 0 : i32
    %c0_i32_1 = arith.constant 0 : i32
    return %c0_i32, %c0_i32_0 : i32, i32
  }
  func.func @transform_3(%arg0: i32) -> (i32, i32) {
    %c0_i32 = arith.constant 0 : i32
    %c0_i32_0 = arith.constant 0 : i32
    %c0_i32_1 = arith.constant 0 : i32
    return %c0_i32, %c0_i32_0 : i32, i32
  }
  func.func @transform_4(%arg0: i32) -> (i32, i32) {
    %c0_i32 = arith.constant 0 : i32
    %c0_i32_0 = arith.constant 0 : i32
    %c0_i32_1 = arith.constant 0 : i32
    return %c0_i32, %c0_i32_0 : i32, i32
  }
  func.func @transform_5(%arg0: i32) -> (i32, i32) {
    %c0_i32 = arith.constant 0 : i32
    %c0_i32_0 = arith.constant 0 : i32
    return %arg0, %c0_i32 : i32, i32
  }
}

</mosaic_0001>

<llo_original>
// kernel: _mlp_forward.1
$region0: #{_mlp_forward.1}
  #allocation0 [shape = 'u32[]', space=smem, size = 0x4, offset = 0x4, fixed_abs, tag = 'smem constant byte address 0x4 - core index']
  #allocation1 [shape = 'u32[144,128]{1,0:T(1,128)}', space=vmem, size = 0x12000, scoped, tag = 'internal scratch']
  %s0 = inlined_call_operand.vmem [shape: f32[2,1024], index: 0, kind: input, shape index: {}]
  %s1 = inlined_call_operand.hbm [shape: bf16[1024,128], index: 1, kind: input, shape index: {}]
  %s2 = inlined_call_operand.vmem [shape: f32[1,128], index: 2, kind: input, shape index: {}]
  %s3 = inlined_call_operand.vmem [shape: bf16[128,128], index: 3, kind: input, shape index: {}]
  %s4 = inlined_call_operand.vmem [shape: f32[1,128], index: 4, kind: input, shape index: {}]
  %s5 = inlined_call_operand.hbm [shape: f32[2,10], index: 5, kind: output, shape index: {}]
  %s6 = sld [smem:[#allocation0]]
  $region34: #{_mlp_forward.1} parent=0
    _
  %s8 = ssub.s32 1, %s6
  %s9 = scalar_select 0, %s8, %s6
  $region1: #{_mlp_forward.1} parent=0
    #allocation2 [shape = 'u8[262144]{0}', space=vmem, size = 0x40000, scoped, tag = 'input window, operand 1, single buffered']
    #allocation3 [shape = 's32[1]{0}', space=sflag, size = 0x4, scoped, tag = 'scoped memory for _mlp_forward.1']
    #allocation4 [shape = 's32[1]{0}', space=sflag, size = 0x4, scoped, tag = 'scoped memory for _mlp_forward.1']
    #allocation5 [shape = 'u8[8192]{0}', space=vmem, size = 0x2000, scoped, tag = 'output window, operand 0, single buffered']
    %10 = vsyncpa [#allocation3], 0
    %11 = vsyncpa [#allocation4], 0
    // Predicated region
    $region2: #{_mlp_forward.1} parent=1 // pred_check
      _
    $region3: #{_mlp_forward.1} parent=1 // pred_check_branch
      %13 = sbr.rel (0) target = $region5
    $region4: #{_mlp_forward.1} parent=1 // pred_region
      _
    $region5: #{_mlp_forward.1} parent=1 // pred_fallthru
      _
    // Predicated region
    $region6: #{_mlp_forward.1} parent=1 // pred_check
      _
    $region7: #{_mlp_forward.1} parent=1 // pred_check_branch
      %15 = sbr.rel (0) target = $region9
    $region8: #{_mlp_forward.1} parent=1 // pred_region
      %s17 = ssub.s32 8192, 8192
      %18 = vsyncadd [#allocation3], %s17
      %s19 = sshll.u32 [#allocation2], 4
      %s20 = int_to_ptr.vmem [resolvable:$true] %s19
      %25 = dma.hbm_to_vmem [thread:$0]  %s1, 8192, %s20, [#allocation3], 64, 64, 4
    $region9: #{_mlp_forward.1} parent=1 // pred_fallthru
      _
    // Predicated region
    $region10: #{_mlp_forward.1} parent=1 // pred_check
      _
    $region11: #{_mlp_forward.1} parent=1 // pred_check_branch
      %27 = sbr.rel (0) target = $region13
    $region12: #{_mlp_forward.1} parent=1 // pred_region
      _
    $region13: #{_mlp_forward.1} parent=1 // pred_fallthru
      _
    // Predicated region
    $region14: #{_mlp_forward.1} parent=1 // pred_check
      _
    $region15: #{_mlp_forward.1} parent=1 // pred_check_branch
      %29 = sbr.rel (0) target = $region17
    $region16: #{_mlp_forward.1} parent=1 // pred_region
      _
    $region17: #{_mlp_forward.1} parent=1 // pred_fallthru
      _
    // Predicated region
    $region18: #{_mlp_forward.1} parent=1 // pred_check
      _
    $region19: #{_mlp_forward.1} parent=1 // pred_check_branch
      %31 = sbr.rel (0) target = $region21
    $region20: #{_mlp_forward.1} parent=1 // pred_region
      _
    $region21: #{_mlp_forward.1} parent=1 // pred_fallthru
      _
    // Predicated region
    $region22: #{_mlp_forward.1} parent=1 // pred_check
      _
    $region23: #{_mlp_forward.1} parent=1 // pred_check_branch
      %33 = sbr.rel (0) target = $region25
    $region24: #{_mlp_forward.1} parent=1 // pred_region
      %34 = dma.done [#allocation3], 8192
    $region25: #{_mlp_forward.1} parent=1 // pred_fallthru
      _
    %v36 = vld [vmem:[%s0] sm:$0xff]
    %v37 = vld [vmem:[%s0 + $0x8] sm:$0xff]
    %v38 = vld [vmem:[%s0 + $0x10] sm:$0xff]
    %v39 = vld [vmem:[%s0 + $0x18] sm:$0xff]
    %v40 = vld [vmem:[%s0 + $0x20] sm:$0xff]
    %v41 = vld [vmem:[%s0 + $0x28] sm:$0xff]
    %v42 = vld [vmem:[%s0 + $0x30] sm:$0xff]
    %v43 = vld [vmem:[%s0 + $0x38] sm:$0xff]
    %v44 = vld [vmem:[%s0 + $0x40] sm:$0xff]
    %v45 = vld [vmem:[%s0 + $0x48] sm:$0xff]
    %v46 = vld [vmem:[%s0 + $0x50] sm:$0xff]
    %v47 = vld [vmem:[%s0 + $0x58] sm:$0xff]
    %v48 = vld [vmem:[%s0 + $0x60] sm:$0xff]
    %v49 = vld [vmem:[%s0 + $0x68] sm:$0xff]
    %v50 = vld [vmem:[%s0 + $0x70] sm:$0xff]
    %v51 = vld [vmem:[%s0 + $0x78] sm:$0xff]
    %v68 = vcombine.low %v36, %v38
    %v69 = vcombine.high %v36, %v38
    %v70 = vcombine.low %v40, %v42
    %v71 = vcombine.high %v40, %v42
    %v73 = vunpack.c.l.s4 1983009808
    %v74 = vunpack.c.0.s8 %v73
    %v75 = vlaneseq
    %v76 = vshrl.u32 %v75, 7
    %v77 = vsub.s32 %v74, %v76
    %v78 = vrot.slane %v68, %v77
    %v80 = vunpack.c.l.s4 1983009808
    %v81 = vunpack.c.0.s8 %v80
    %v82 = vlaneseq
    %v83 = vshrl.u32 %v82, 7
    %v84 = vsub.s32 %v81, %v83
    %v85 = vrot.slane %v69, %v84
    %v87 = vunpack.c.l.s4 1983009808
    %v88 = vunpack.c.0.s8 %v87
    %v89 = vlaneseq
    %v90 = vshrl.u32 %v89, 7
    %v91 = vsub.s32 %v88, %v90
    %v92 = vrot.slane %v70, %v91
    %v94 = vunpack.c.l.s4 1983009808
    %v95 = vunpack.c.0.s8 %v94
    %v96 = vlaneseq
    %v97 = vshrl.u32 %v96, 7
    %v98 = vsub.s32 %v95, %v97
    %v99 = vrot.slane %v71, %v98
    %v100 = vcombine.low %v78, %v92
    %v101 = vcombine.high %v78, %v92
    %v102 = vcombine.low %v85, %v99
    %v103 = vcombine.high %v85, %v99
    %v104 = vcombine.low %v37, %v39
    %v105 = vcombine.high %v37, %v39
    %v106 = vcombine.low %v41, %v43
    %v107 = vcombine.high %v41, %v43
    %v109 = vunpack.c.l.s4 1983009808
    %v110 = vunpack.c.0.s8 %v109
    %v111 = vlaneseq
    %v112 = vshrl.u32 %v111, 7
    %v113 = vsub.s32 %v110, %v112
    %v114 = vrot.slane %v104, %v113
    %v116 = vunpack.c.l.s4 1983009808
    %v117 = vunpack.c.0.s8 %v116
    %v118 = vlaneseq
    %v119 = vshrl.u32 %v118, 7
    %v120 = vsub.s32 %v117, %v119
    %v121 = vrot.slane %v105, %v120
    %v123 = vunpack.c.l.s4 1983009808
    %v124 = vunpack.c.0.s8 %v123
    %v125 = vlaneseq
    %v126 = vshrl.u32 %v125, 7
    %v127 = vsub.s32 %v124, %v126
    %v128 = vrot.slane %v106, %v127
    %v130 = vunpack.c.l.s4 1983009808
    %v131 = vunpack.c.0.s8 %v130
    %v132 = vlaneseq
    %v133 = vshrl.u32 %v132, 7
    %v134 = vsub.s32 %v131, %v133
    %v135 = vrot.slane %v107, %v134
    %v136 = vcombine.low %v114, %v128
    %v137 = vcombine.high %v114, %v128
    %v138 = vcombine.low %v121, %v135
    %v139 = vcombine.high %v121, %v135
    %v140 = vcombine.low %v44, %v46
    %v141 = vcombine.high %v44, %v46
    %v142 = vcombine.low %v48, %v50
    %v143 = vcombine.high %v48, %v50
    %v145 = vunpack.c.l.s4 1983009808
    %v146 = vunpack.c.0.s8 %v145
    %v147 = vlaneseq
    %v148 = vshrl.u32 %v147, 7
    %v149 = vsub.s32 %v146, %v148
    %v150 = vrot.slane %v140, %v149
    %v152 = vunpack.c.l.s4 1983009808
    %v153 = vunpack.c.0.s8 %v152
    %v154 = vlaneseq
    %v155 = vshrl.u32 %v154, 7
    %v156 = vsub.s32 %v153, %v155
    %v157 = vrot.slane %v141, %v156
    %v159 = vunpack.c.l.s4 1983009808
    %v160 = vunpack.c.0.s8 %v159
    %v161 = vlaneseq
    %v162 = vshrl.u32 %v161, 7
    %v163 = vsub.s32 %v160, %v162
    %v164 = vrot.slane %v142, %v163
    %v166 = vunpack.c.l.s4 1983009808
    %v167 = vunpack.c.0.s8 %v166
    %v168 = vlaneseq
    %v169 = vshrl.u32 %v168, 7
    %v170 = vsub.s32 %v167, %v169
    %v171 = vrot.slane %v143, %v170
    %v172 = vcombine.low %v150, %v164
    %v173 = vcombine.high %v150, %v164
    %v174 = vcombine.low %v157, %v171
    %v175 = vcombine.high %v157, %v171
    %v176 = vcombine.low %v45, %v47
    %v177 = vcombine.high %v45, %v47
    %v178 = vcombine.low %v49, %v51
    %v179 = vcombine.high %v49, %v51
    %v181 = vunpack.c.l.s4 1983009808
    %v182 = vunpack.c.0.s8 %v181
    %v183 = vlaneseq
    %v184 = vshrl.u32 %v183, 7
    %v185 = vsub.s32 %v182, %v184
    %v186 = vrot.slane %v176, %v185
    %v188 = vunpack.c.l.s4 1983009808
    %v189 = vunpack.c.0.s8 %v188
    %v190 = vlaneseq
    %v191 = vshrl.u32 %v190, 7
    %v192 = vsub.s32 %v189, %v191
    %v193 = vrot.slane %v177, %v192
    %v195 = vunpack.c.l.s4 1983009808
    %v196 = vunpack.c.0.s8 %v195
    %v197 = vlaneseq
    %v198 = vshrl.u32 %v197, 7
    %v199 = vsub.s32 %v196, %v198
    %v200 = vrot.slane %v178, %v199
    %v202 = vunpack.c.l.s4 1983009808
    %v203 = vunpack.c.0.s8 %v202
    %v204 = vlaneseq
    %v205 = vshrl.u32 %v204, 7
    %v206 = vsub.s32 %v203, %v205
    %v207 = vrot.slane %v179, %v206
    %v208 = vcombine.low %v186, %v200
    %v209 = vcombine.high %v186, %v200
    %v210 = vcombine.low %v193, %v207
    %v211 = vcombine.high %v193, %v207
    %v228 = vpack.c.bf16 %v172, %v100
    %v229 = vpack.c.bf16 %v173, %v101
    %v230 = vpack.c.bf16 %v174, %v102
    %v231 = vpack.c.bf16 %v175, %v103
    %v232 = vpack.c.bf16 %v208, %v136
    %v233 = vpack.c.bf16 %v209, %v137
    %v234 = vpack.c.bf16 %v210, %v138
    %v235 = vpack.c.bf16 %v211, %v139
    %v236 = vld [vmem:[#allocation2] sm:$0xf]
    %v237 = vld [vmem:[#allocation2 + $0x4] sm:$0xf]
    %v238 = vld [vmem:[#allocation2 + $0x8] sm:$0xf]
    %v239 = vld [vmem:[#allocation2 + $0xc] sm:$0xf]
    %v240 = vld [vmem:[#allocation2 + $0x10] sm:$0xf]
    %v241 = vld [vmem:[#allocation2 + $0x14] sm:$0xf]
    %v242 = vld [vmem:[#allocation2 + $0x18] sm:$0xf]
    %v243 = vld [vmem:[#allocation2 + $0x1c] sm:$0xf]
    %v244 = vld [vmem:[#allocation2 + $0x20] sm:$0xf]
    %v245 = vld [vmem:[#allocation2 + $0x24] sm:$0xf]
    %v246 = vld [vmem:[#allocation2 + $0x28] sm:$0xf]
    %v247 = vld [vmem:[#allocation2 + $0x2c] sm:$0xf]
    %v248 = vld [vmem:[#allocation2 + $0x30] sm:$0xf]
    %v249 = vld [vmem:[#allocation2 + $0x34] sm:$0xf]
    %v250 = vld [vmem:[#allocation2 + $0x38] sm:$0xf]
    %v251 = vld [vmem:[#allocation2 + $0x3c] sm:$0xf]
    %v252 = vld [vmem:[#allocation2 + $0x40] sm:$0xf]
    %v253 = vld [vmem:[#allocation2 + $0x44] sm:$0xf]
    %v254 = vld [vmem:[#allocation2 + $0x48] sm:$0xf]
    %v255 = vld [vmem:[#allocation2 + $0x4c] sm:$0xf]
    %v256 = vld [vmem:[#allocation2 + $0x50] sm:$0xf]
    %v257 = vld [vmem:[#allocation2 + $0x54] sm:$0xf]
    %v258 = vld [vmem:[#allocation2 + $0x58] sm:$0xf]
    %v259 = vld [vmem:[#allocation2 + $0x5c] sm:$0xf]
    %v260 = vld [vmem:[#allocation2 + $0x60] sm:$0xf]
    %v261 = vld [vmem:[#allocation2 + $0x64] sm:$0xf]
    %v262 = vld [vmem:[#allocation2 + $0x68] sm:$0xf]
    %v263 = vld [vmem:[#allocation2 + $0x6c] sm:$0xf]
    %v264 = vld [vmem:[#allocation2 + $0x70] sm:$0xf]
    %v265 = vld [vmem:[#allocation2 + $0x74] sm:$0xf]
    %v266 = vld [vmem:[#allocation2 + $0x78] sm:$0xf]
    %v267 = vld [vmem:[#allocation2 + $0x7c] sm:$0xf]
    %v268 = vld [vmem:[#allocation2 + $0x80] sm:$0xf]
    %v269 = vld [vmem:[#allocation2 + $0x84] sm:$0xf]
    %v270 = vld [vmem:[#allocation2 + $0x88] sm:$0xf]
    %v271 = vld [vmem:[#allocation2 + $0x8c] sm:$0xf]
    %v272 = vld [vmem:[#allocation2 + $0x90] sm:$0xf]
    %v273 = vld [vmem:[#allocation2 + $0x94] sm:$0xf]
    %v274 = vld [vmem:[#allocation2 + $0x98] sm:$0xf]
    %v275 = vld [vmem:[#allocation2 + $0x9c] sm:$0xf]
    %v276 = vld [vmem:[#allocation2 + $0xa0] sm:$0xf]
    %v277 = vld [vmem:[#allocation2 + $0xa4] sm:$0xf]
    %v278 = vld [vmem:[#allocation2 + $0xa8] sm:$0xf]
    %v279 = vld [vmem:[#allocation2 + $0xac] sm:$0xf]
    %v280 = vld [vmem:[#allocation2 + $0xb0] sm:$0xf]
    %v281 = vld [vmem:[#allocation2 + $0xb4] sm:$0xf]
    %v282 = vld [vmem:[#allocation2 + $0xb8] sm:$0xf]
    %v283 = vld [vmem:[#allocation2 + $0xbc] sm:$0xf]
    %v284 = vld [vmem:[#allocation2 + $0xc0] sm:$0xf]
    %v285 = vld [vmem:[#allocation2 + $0xc4] sm:$0xf]
    %v286 = vld [vmem:[#allocation2 + $0xc8] sm:$0xf]
    %v287 = vld [vmem:[#allocation2 + $0xcc] sm:$0xf]
    %v288 = vld [vmem:[#allocation2 + $0xd0] sm:$0xf]
    %v289 = vld [vmem:[#allocation2 + $0xd4] sm:$0xf]
    %v290 = vld [vmem:[#allocation2 + $0xd8] sm:$0xf]
    %v291 = vld [vmem:[#allocation2 + $0xdc] sm:$0xf]
    %v292 = vld [vmem:[#allocation2 + $0xe0] sm:$0xf]
    %v293 = vld [vmem:[#allocation2 + $0xe4] sm:$0xf]
    %v294 = vld [vmem:[#allocation2 + $0xe8] sm:$0xf]
    %v295 = vld [vmem:[#allocation2 + $0xec] sm:$0xf]
    %v296 = vld [vmem:[#allocation2 + $0xf0] sm:$0xf]
    %v297 = vld [vmem:[#allocation2 + $0xf4] sm:$0xf]
    %v298 = vld [vmem:[#allocation2 + $0xf8] sm:$0xf]
    %v299 = vld [vmem:[#allocation2 + $0xfc] sm:$0xf]
    %v300 = vld [vmem:[#allocation2 + $0x100] sm:$0xf]
    %v301 = vld [vmem:[#allocation2 + $0x104] sm:$0xf]
    %v302 = vld [vmem:[#allocation2 + $0x108] sm:$0xf]
    %v303 = vld [vmem:[#allocation2 + $0x10c] sm:$0xf]
    %v304 = vld [vmem:[#allocation2 + $0x110] sm:$0xf]
    %v305 = vld [vmem:[#allocation2 + $0x114] sm:$0xf]
    %v306 = vld [vmem:[#allocation2 + $0x118] sm:$0xf]
    %v307 = vld [vmem:[#allocation2 + $0x11c] sm:$0xf]
    %v308 = vld [vmem:[#allocation2 + $0x120] sm:$0xf]
    %v309 = vld [vmem:[#allocation2 + $0x124] sm:$0xf]
    %v310 = vld [vmem:[#allocation2 + $0x128] sm:$0xf]
    %v311 = vld [vmem:[#allocation2 + $0x12c] sm:$0xf]
    %v312 = vld [vmem:[#allocation2 + $0x130] sm:$0xf]
    %v313 = vld [vmem:[#allocation2 + $0x134] sm:$0xf]
    %v314 = vld [vmem:[#allocation2 + $0x138] sm:$0xf]
    %v315 = vld [vmem:[#allocation2 + $0x13c] sm:$0xf]
    %v316 = vld [vmem:[#allocation2 + $0x140] sm:$0xf]
    %v317 = vld [vmem:[#allocation2 + $0x144] sm:$0xf]
    %v318 = vld [vmem:[#allocation2 + $0x148] sm:$0xf]
    %v319 = vld [vmem:[#allocation2 + $0x14c] sm:$0xf]
    %v320 = vld [vmem:[#allocation2 + $0x150] sm:$0xf]
    %v321 = vld [vmem:[#allocation2 + $0x154] sm:$0xf]
    %v322 = vld [vmem:[#allocation2 + $0x158] sm:$0xf]
    %v323 = vld [vmem:[#allocation2 + $0x15c] sm:$0xf]
    %v324 = vld [vmem:[#allocation2 + $0x160] sm:$0xf]
    %v325 = vld [vmem:[#allocation2 + $0x164] sm:$0xf]
    %v326 = vld [vmem:[#allocation2 + $0x168] sm:$0xf]
    %v327 = vld [vmem:[#allocation2 + $0x16c] sm:$0xf]
    %v328 = vld [vmem:[#allocation2 + $0x170] sm:$0xf]
    %v329 = vld [vmem:[#allocation2 + $0x174] sm:$0xf]
    %v330 = vld [vmem:[#allocation2 + $0x178] sm:$0xf]
    %v331 = vld [vmem:[#allocation2 + $0x17c] sm:$0xf]
    %v332 = vld [vmem:[#allocation2 + $0x180] sm:$0xf]
    %v333 = vld [vmem:[#allocation2 + $0x184] sm:$0xf]
    %v334 = vld [vmem:[#allocation2 + $0x188] sm:$0xf]
    %v335 = vld [vmem:[#allocation2 + $0x18c] sm:$0xf]
    %v336 = vld [vmem:[#allocation2 + $0x190] sm:$0xf]
    %v337 = vld [vmem:[#allocation2 + $0x194] sm:$0xf]
    %v338 = vld [vmem:[#allocation2 + $0x198] sm:$0xf]
    %v339 = vld [vmem:[#allocation2 + $0x19c] sm:$0xf]
    %v340 = vld [vmem:[#allocation2 + $0x1a0] sm:$0xf]
    %v341 = vld [vmem:[#allocation2 + $0x1a4] sm:$0xf]
    %v342 = vld [vmem:[#allocation2 + $0x1a8] sm:$0xf]
    %v343 = vld [vmem:[#allocation2 + $0x1ac] sm:$0xf]
    %v344 = vld [vmem:[#allocation2 + $0x1b0] sm:$0xf]
    %v345 = vld [vmem:[#allocation2 + $0x1b4] sm:$0xf]
    %v346 = vld [vmem:[#allocation2 + $0x1b8] sm:$0xf]
    %v347 = vld [vmem:[#allocation2 + $0x1bc] sm:$0xf]
    %v348 = vld [vmem:[#allocation2 + $0x1c0] sm:$0xf]
    %v349 = vld [vmem:[#allocation2 + $0x1c4] sm:$0xf]
    %v350 = vld [vmem:[#allocation2 + $0x1c8] sm:$0xf]
    %v351 = vld [vmem:[#allocation2 + $0x1cc] sm:$0xf]
    %v352 = vld [vmem:[#allocation2 + $0x1d0] sm:$0xf]
    %v353 = vld [vmem:[#allocation2 + $0x1d4] sm:$0xf]
    %v354 = vld [vmem:[#allocation2 + $0x1d8] sm:$0xf]
    %v355 = vld [vmem:[#allocation2 + $0x1dc] sm:$0xf]
    %v356 = vld [vmem:[#allocation2 + $0x1e0] sm:$0xf]
    %v357 = vld [vmem:[#allocation2 + $0x1e4] sm:$0xf]
    %v358 = vld [vmem:[#allocation2 + $0x1e8] sm:$0xf]
    %v359 = vld [vmem:[#allocation2 + $0x1ec] sm:$0xf]
    %v360 = vld [vmem:[#allocation2 + $0x1f0] sm:$0xf]
    %v361 = vld [vmem:[#allocation2 + $0x1f4] sm:$0xf]
    %v362 = vld [vmem:[#allocation2 + $0x1f8] sm:$0xf]
    %v363 = vld [vmem:[#allocation2 + $0x1fc] sm:$0xf]
    %v364 = vld [vmem:[%s2] sm:$0x1]
    %v366 = vlaneseq
    %v367 = vshrl.u32 %v366, 7
    %v368 = vsub.s32 0, %v367
    %v369 = vrot.slane %v364, %v368
    %v499 = vunpack.c.l.b16 %v236
    %v500 = vunpack.c.l.b16 %v237
    %v501 = vunpack.c.l.b16 %v238
    %v502 = vunpack.c.l.b16 %v239
    %v503 = vunpack.c.l.b16 %v240
    %v504 = vunpack.c.l.b16 %v241
    %v505 = vunpack.c.l.b16 %v242
    %v506 = vunpack.c.l.b16 %v243
    %v507 = vunpack.c.l.b16 %v244
    %v508 = vunpack.c.l.b16 %v245
    %v509 = vunpack.c.l.b16 %v246
    %v510 = vunpack.c.l.b16 %v247
    %v511 = vunpack.c.l.b16 %v248
    %v512 = vunpack.c.l.b16 %v249
    %v513 = vunpack.c.l.b16 %v250
    %v514 = vunpack.c.l.b16 %v251
    %v515 = vunpack.c.l.b16 %v252
    %v516 = vunpack.c.l.b16 %v253
    %v517 = vunpack.c.l.b16 %v254
    %v518 = vunpack.c.l.b16 %v255
    %v519 = vunpack.c.l.b16 %v256
    %v520 = vunpack.c.l.b16 %v257
    %v521 = vunpack.c.l.b16 %v258
    %v522 = vunpack.c.l.b16 %v259
    %v523 = vunpack.c.l.b16 %v260
    %v524 = vunpack.c.l.b16 %v261
    %v525 = vunpack.c.l.b16 %v262
    %v526 = vunpack.c.l.b16 %v263
    %v527 = vunpack.c.l.b16 %v264
    %v528 = vunpack.c.l.b16 %v265
    %v529 = vunpack.c.l.b16 %v266
    %v530 = vunpack.c.l.b16 %v267
    %v531 = vunpack.c.l.b16 %v268
    %v532 = vunpack.c.l.b16 %v269
    %v533 = vunpack.c.l.b16 %v270
    %v534 = vunpack.c.l.b16 %v271
    %v535 = vunpack.c.l.b16 %v272
    %v536 = vunpack.c.l.b16 %v273
    %v537 = vunpack.c.l.b16 %v274
    %v538 = vunpack.c.l.b16 %v275
    %v539 = vunpack.c.l.b16 %v276
    %v540 = vunpack.c.l.b16 %v277
    %v541 = vunpack.c.l.b16 %v278
    %v542 = vunpack.c.l.b16 %v279
    %v543 = vunpack.c.l.b16 %v280
    %v544 = vunpack.c.l.b16 %v281
    %v545 = vunpack.c.l.b16 %v282
    %v546 = vunpack.c.l.b16 %v283
    %v547 = vunpack.c.l.b16 %v284
    %v548 = vunpack.c.l.b16 %v285
    %v549 = vunpack.c.l.b16 %v286
    %v550 = vunpack.c.l.b16 %v287
    %v551 = vunpack.c.l.b16 %v288
    %v552 = vunpack.c.l.b16 %v289
    %v553 = vunpack.c.l.b16 %v290
    %v554 = vunpack.c.l.b16 %v291
    %v555 = vunpack.c.l.b16 %v292
    %v556 = vunpack.c.l.b16 %v293
    %v557 = vunpack.c.l.b16 %v294
    %v558 = vunpack.c.l.b16 %v295
    %v559 = vunpack.c.l.b16 %v296
    %v560 = vunpack.c.l.b16 %v297
    %v561 = vunpack.c.l.b16 %v298
    %v562 = vunpack.c.l.b16 %v299
    %v563 = vunpack.c.l.b16 %v300
    %v564 = vunpack.c.l.b16 %v301
    %v565 = vunpack.c.l.b16 %v302
    %v566 = vunpack.c.l.b16 %v303
    %v567 = vunpack.c.l.b16 %v304
    %v568 = vunpack.c.l.b16 %v305
    %v569 = vunpack.c.l.b16 %v306
    %v570 = vunpack.c.l.b16 %v307
    %v571 = vunpack.c.l.b16 %v308
    %v572 = vunpack.c.l.b16 %v309
    %v573 = vunpack.c.l.b16 %v310
    %v574 = vunpack.c.l.b16 %v311
    %v575 = vunpack.c.l.b16 %v312
    %v576 = vunpack.c.l.b16 %v313
    %v577 = vunpack.c.l.b16 %v314
    %v578 = vunpack.c.l.b16 %v315
    %v579 = vunpack.c.l.b16 %v316
    %v580 = vunpack.c.l.b16 %v317
    %v581 = vunpack.c.l.b16 %v318
    %v582 = vunpack.c.l.b16 %v319
    %v583 = vunpack.c.l.b16 %v320
    %v584 = vunpack.c.l.b16 %v321
    %v585 = vunpack.c.l.b16 %v322
    %v586 = vunpack.c.l.b16 %v323
    %v587 = vunpack.c.l.b16 %v324
    %v588 = vunpack.c.l.b16 %v325
    %v589 = vunpack.c.l.b16 %v326
    %v590 = vunpack.c.l.b16 %v327
    %v591 = vunpack.c.l.b16 %v328
    %v592 = vunpack.c.l.b16 %v329
    %v593 = vunpack.c.l.b16 %v330
    %v594 = vunpack.c.l.b16 %v331
    %v595 = vunpack.c.l.b16 %v332
    %v596 = vunpack.c.l.b16 %v333
    %v597 = vunpack.c.l.b16 %v334
    %v598 = vunpack.c.l.b16 %v335
    %v599 = vunpack.c.l.b16 %v336
    %v600 = vunpack.c.l.b16 %v337
    %v601 = vunpack.c.l.b16 %v338
    %v602 = vunpack.c.l.b16 %v339
    %v603 = vunpack.c.l.b16 %v340
    %v604 = vunpack.c.l.b16 %v341
    %v605 = vunpack.c.l.b16 %v342
    %v606 = vunpack.c.l.b16 %v343
    %v607 = vunpack.c.l.b16 %v344
    %v608 = vunpack.c.l.b16 %v345
    %v609 = vunpack.c.l.b16 %v346
    %v610 = vunpack.c.l.b16 %v347
    %v611 = vunpack.c.l.b16 %v348
    %v612 = vunpack.c.l.b16 %v349
    %v613 = vunpack.c.l.b16 %v350
    %v614 = vunpack.c.l.b16 %v351
    %v615 = vunpack.c.l.b16 %v352
    %v616 = vunpack.c.l.b16 %v353
    %v617 = vunpack.c.l.b16 %v354
    %v618 = vunpack.c.l.b16 %v355
    %v619 = vunpack.c.l.b16 %v356
    %v620 = vunpack.c.l.b16 %v357
    %v621 = vunpack.c.l.b16 %v358
    %v622 = vunpack.c.l.b16 %v359
    %v623 = vunpack.c.l.b16 %v360
    %v624 = vunpack.c.l.b16 %v361
    %v625 = vunpack.c.l.b16 %v362
    %v626 = vunpack.c.l.b16 %v363
    %v627 = vpack.c.b16 %v500, %v499
    %v628 = vpack.c.b16 %v502, %v501
    %v629 = vpack.c.b16 %v504, %v503
    %v630 = vpack.c.b16 %v506, %v505
    %v631 = vpack.c.b16 %v508, %v507
    %v632 = vpack.c.b16 %v510, %v509
    %v633 = vpack.c.b16 %v512, %v511
    %v634 = vpack.c.b16 %v514, %v513
    %v635 = vpack.c.b16 %v516, %v515
    %v636 = vpack.c.b16 %v518, %v517
    %v637 = vpack.c.b16 %v520, %v519
    %v638 = vpack.c.b16 %v522, %v521
    %v639 = vpack.c.b16 %v524, %v523
    %v640 = vpack.c.b16 %v526, %v525
    %v641 = vpack.c.b16 %v528, %v527
    %v642 = vpack.c.b16 %v530, %v529
    %v643 = vpack.c.b16 %v532, %v531
    %v644 = vpack.c.b16 %v534, %v533
    %v645 = vpack.c.b16 %v536, %v535
    %v646 = vpack.c.b16 %v538, %v537
    %v647 = vpack.c.b16 %v540, %v539
    %v648 = vpack.c.b16 %v542, %v541
    %v649 = vpack.c.b16 %v544, %v543
    %v650 = vpack.c.b16 %v546, %v545
    %v651 = vpack.c.b16 %v548, %v547
    %v652 = vpack.c.b16 %v550, %v549
    %v653 = vpack.c.b16 %v552, %v551
    %v654 = vpack.c.b16 %v554, %v553
    %v655 = vpack.c.b16 %v556, %v555
    %v656 = vpack.c.b16 %v558, %v557
    %v657 = vpack.c.b16 %v560, %v559
    %v658 = vpack.c.b16 %v562, %v561
    %v659 = vpack.c.b16 %v564, %v563
    %v660 = vpack.c.b16 %v566, %v565
    %v661 = vpack.c.b16 %v568, %v567
    %v662 = vpack.c.b16 %v570, %v569
    %v663 = vpack.c.b16 %v572, %v571
    %v664 = vpack.c.b16 %v574, %v573
    %v665 = vpack.c.b16 %v576, %v575
    %v666 = vpack.c.b16 %v578, %v577
    %v667 = vpack.c.b16 %v580, %v579
    %v668 = vpack.c.b16 %v582, %v581
    %v669 = vpack.c.b16 %v584, %v583
    %v670 = vpack.c.b16 %v586, %v585
    %v671 = vpack.c.b16 %v588, %v587
    %v672 = vpack.c.b16 %v590, %v589
    %v673 = vpack.c.b16 %v592, %v591
    %v674 = vpack.c.b16 %v594, %v593
    %v675 = vpack.c.b16 %v596, %v595
    %v676 = vpack.c.b16 %v598, %v597
    %v677 = vpack.c.b16 %v600, %v599
    %v678 = vpack.c.b16 %v602, %v601
    %v679 = vpack.c.b16 %v604, %v603
    %v680 = vpack.c.b16 %v606, %v605
    %v681 = vpack.c.b16 %v608, %v607
    %v682 = vpack.c.b16 %v610, %v609
    %v683 = vpack.c.b16 %v612, %v611
    %v684 = vpack.c.b16 %v614, %v613
    %v685 = vpack.c.b16 %v616, %v615
    %v686 = vpack.c.b16 %v618, %v617
    %v687 = vpack.c.b16 %v620, %v619
    %v688 = vpack.c.b16 %v622, %v621
    %v689 = vpack.c.b16 %v624, %v623
    %v690 = vpack.c.b16 %v626, %v625
    %755 = vmatprep.subr.bf16.mxu0 0
    %756 = vmatpush1.bf16.msra.mxu0 %v627
    %757 = vmatprep.subr.bf16.mxu0 0
    %758 = vmatpush1.bf16.msra.mxu0 %v628
    %759 = vmatprep.subr.bf16.mxu0 0
    %760 = vmatpush1.bf16.msra.mxu0 %v629
    %761 = vmatprep.subr.bf16.mxu0 0
    %762 = vmatpush1.bf16.msra.mxu0 %v630
    %763 = vmatprep.subr.bf16.mxu0 0
    %764 = vmatpush1.bf16.msra.mxu0 %v631
    %765 = vmatprep.subr.bf16.mxu0 0
    %766 = vmatpush1.bf16.msra.mxu0 %v632
    %767 = vmatprep.subr.bf16.mxu0 0
    %768 = vmatpush1.bf16.msra.mxu0 %v633
    %769 = vmatprep.subr.bf16.mxu0 0
    %770 = vmatpush1.bf16.msra.mxu0 %v634
    %771 = vmatprep.subr.bf16.mxu0 0
    %772 = vmatpush1.bf16.msra.mxu0 %v635
    %773 = vmatprep.subr.bf16.mxu0 0
    %774 = vmatpush1.bf16.msra.mxu0 %v636
    %775 = vmatprep.subr.bf16.mxu0 0
    %776 = vmatpush1.bf16.msra.mxu0 %v637
    %777 = vmatprep.subr.bf16.mxu0 0
    %778 = vmatpush1.bf16.msra.mxu0 %v638
    %779 = vmatprep.subr.bf16.mxu0 0
    %780 = vmatpush1.bf16.msra.mxu0 %v639
    %781 = vmatprep.subr.bf16.mxu0 0
    %782 = vmatpush1.bf16.msra.mxu0 %v640
    %783 = vmatprep.subr.bf16.mxu0 0
    %784 = vmatpush1.bf16.msra.mxu0 %v641
    %785 = vmatprep.subr.bf16.mxu0 0
    %786 = vmatpush1.bf16.msra.mxu0 %v642
    %787 = vmatprep.mubr.bf16.mxu0 %v229
    %788 = vmatmul.mubr.bf16.gmra.mrb[0].mxu0 %v228
    %v789 = vpop.f32.mrb[0].mxu0
    %v790 = vadd.f32 %v369, %v789
    %v791 = vpop.f32.mrb[0].mxu0
    %v792 = vpop.f32.mrb[0].mxu0
    %v793 = vadd.f32 %v369, %v792
    %v794 = vpop.f32.mrb[0].mxu0
    %795 = vdwg.mxu0
    %796 = vmatprep.subr.bf16.mxu0 0
    %797 = vmatpush1.bf16.msra.mxu0 %v643
    %798 = vmatprep.subr.bf16.mxu0 0
    %799 = vmatpush1.bf16.msra.mxu0 %v644
    %800 = vmatprep.subr.bf16.mxu0 0
    %801 = vmatpush1.bf16.msra.mxu0 %v645
    %802 = vmatprep.subr.bf16.mxu0 0
    %803 = vmatpush1.bf16.msra.mxu0 %v646
    %804 = vmatprep.subr.bf16.mxu0 0
    %805 = vmatpush1.bf16.msra.mxu0 %v647
    %806 = vmatprep.subr.bf16.mxu0 0
    %807 = vmatpush1.bf16.msra.mxu0 %v648
    %808 = vmatprep.subr.bf16.mxu0 0
    %809 = vmatpush1.bf16.msra.mxu0 %v649
    %810 = vmatprep.subr.bf16.mxu0 0
    %811 = vmatpush1.bf16.msra.mxu0 %v650
    %812 = vmatprep.subr.bf16.mxu0 0
    %813 = vmatpush1.bf16.msra.mxu0 %v651
    %814 = vmatprep.subr.bf16.mxu0 0
    %815 = vmatpush1.bf16.msra.mxu0 %v652
    %816 = vmatprep.subr.bf16.mxu0 0
    %817 = vmatpush1.bf16.msra.mxu0 %v653
    %818 = vmatprep.subr.bf16.mxu0 0
    %819 = vmatpush1.bf16.msra.mxu0 %v654
    %820 = vmatprep.subr.bf16.mxu0 0
    %821 = vmatpush1.bf16.msra.mxu0 %v655
    %822 = vmatprep.subr.bf16.mxu0 0
    %823 = vmatpush1.bf16.msra.mxu0 %v656
    %824 = vmatprep.subr.bf16.mxu0 0
    %825 = vmatpush1.bf16.msra.mxu0 %v657
    %826 = vmatprep.subr.bf16.mxu0 0
    %827 = vmatpush1.bf16.msra.mxu0 %v658
    %828 = vmatprep.mubr.bf16.mxu0 %v231
    %829 = vmatmul.mubr.bf16.gmra.mrb[0].mxu0 %v230
    %v830 = vpop.f32.mrb[0].mxu0
    %v831 = vadd.f32 %v790, %v830
    %v832 = vpop.f32.mrb[0].mxu0
    %v833 = vpop.f32.mrb[0].mxu0
    %v834 = vadd.f32 %v793, %v833
    %v835 = vpop.f32.mrb[0].mxu0
    %836 = vdwg.mxu0
    %837 = vmatprep.subr.bf16.mxu0 0
    %838 = vmatpush1.bf16.msra.mxu0 %v659
    %839 = vmatprep.subr.bf16.mxu0 0
    %840 = vmatpush1.bf16.msra.mxu0 %v660
    %841 = vmatprep.subr.bf16.mxu0 0
    %842 = vmatpush1.bf16.msra.mxu0 %v661
    %843 = vmatprep.subr.bf16.mxu0 0
    %844 = vmatpush1.bf16.msra.mxu0 %v662
    %845 = vmatprep.subr.bf16.mxu0 0
    %846 = vmatpush1.bf16.msra.mxu0 %v663
    %847 = vmatprep.subr.bf16.mxu0 0
    %848 = vmatpush1.bf16.msra.mxu0 %v664
    %849 = vmatprep.subr.bf16.mxu0 0
    %850 = vmatpush1.bf16.msra.mxu0 %v665
    %851 = vmatprep.subr.bf16.mxu0 0
    %852 = vmatpush1.bf16.msra.mxu0 %v666
    %853 = vmatprep.subr.bf16.mxu0 0
    %854 = vmatpush1.bf16.msra.mxu0 %v667
    %855 = vmatprep.subr.bf16.mxu0 0
    %856 = vmatpush1.bf16.msra.mxu0 %v668
    %857 = vmatprep.subr.bf16.mxu0 0
    %858 = vmatpush1.bf16.msra.mxu0 %v669
    %859 = vmatprep.subr.bf16.mxu0 0
    %860 = vmatpush1.bf16.msra.mxu0 %v670
    %861 = vmatprep.subr.bf16.mxu0 0
    %862 = vmatpush1.bf16.msra.mxu0 %v671
    %863 = vmatprep.subr.bf16.mxu0 0
    %864 = vmatpush1.bf16.msra.mxu0 %v672
    %865 = vmatprep.subr.bf16.mxu0 0
    %866 = vmatpush1.bf16.msra.mxu0 %v673
    %867 = vmatprep.subr.bf16.mxu0 0
    %868 = vmatpush1.bf16.msra.mxu0 %v674
    %869 = vmatprep.mubr.bf16.mxu0 %v233
    %870 = vmatmul.mubr.bf16.gmra.mrb[0].mxu0 %v232
    %v871 = vpop.f32.mrb[0].mxu0
    %v872 = vadd.f32 %v831, %v871
    %v873 = vpop.f32.mrb[0].mxu0
    %v874 = vpop.f32.mrb[0].mxu0
    %v875 = vadd.f32 %v834, %v874
    %v876 = vpop.f32.mrb[0].mxu0
    %877 = vdwg.mxu0
    %878 = vmatprep.subr.bf16.mxu0 0
    %879 = vmatpush1.bf16.msra.mxu0 %v675
    %880 = vmatprep.subr.bf16.mxu0 0
    %881 = vmatpush1.bf16.msra.mxu0 %v676
    %882 = vmatprep.subr.bf16.mxu0 0
    %883 = vmatpush1.bf16.msra.mxu0 %v677
    %884 = vmatprep.subr.bf16.mxu0 0
    %885 = vmatpush1.bf16.msra.mxu0 %v678
    %886 = vmatprep.subr.bf16.mxu0 0
    %887 = vmatpush1.bf16.msra.mxu0 %v679
    %888 = vmatprep.subr.bf16.mxu0 0
    %889 = vmatpush1.bf16.msra.mxu0 %v680
    %890 = vmatprep.subr.bf16.mxu0 0
    %891 = vmatpush1.bf16.msra.mxu0 %v681
    %892 = vmatprep.subr.bf16.mxu0 0
    %893 = vmatpush1.bf16.msra.mxu0 %v682
    %894 = vmatprep.subr.bf16.mxu0 0
    %895 = vmatpush1.bf16.msra.mxu0 %v683
    %896 = vmatprep.subr.bf16.mxu0 0
    %897 = vmatpush1.bf16.msra.mxu0 %v684
    %898 = vmatprep.subr.bf16.mxu0 0
    %899 = vmatpush1.bf16.msra.mxu0 %v685
    %900 = vmatprep.subr.bf16.mxu0 0
    %901 = vmatpush1.bf16.msra.mxu0 %v686
    %902 = vmatprep.subr.bf16.mxu0 0
    %903 = vmatpush1.bf16.msra.mxu0 %v687
    %904 = vmatprep.subr.bf16.mxu0 0
    %905 = vmatpush1.bf16.msra.mxu0 %v688
    %906 = vmatprep.subr.bf16.mxu0 0
    %907 = vmatpush1.bf16.msra.mxu0 %v689
    %908 = vmatprep.subr.bf16.mxu0 0
    %909 = vmatpush1.bf16.msra.mxu0 %v690
    %910 = vmatprep.mubr.bf16.mxu0 %v235
    %911 = vmatmul.mubr.bf16.gmra.mrb[0].mxu0 %v234
    %v912 = vpop.f32.mrb[0].mxu0
    %v913 = vadd.f32 %v872, %v912
    %v914 = vpop.f32.mrb[0].mxu0
    %v915 = vpop.f32.mrb[0].mxu0
    %v916 = vadd.f32 %v875, %v915
    %v917 = vpop.f32.mrb[0].mxu0
    %918 = vdwg.mxu0
    %v919 = vmax.f32 %v913, 0.0
    %v920 = vmax.f32 %v916, 0.0
    %v921 = vpack.c.bf16 %v920, %v919
    %v922 = vld [vmem:[%s3] sm:$0xf]
    %v923 = vld [vmem:[%s3 + $0x4] sm:$0xf]
    %v924 = vld [vmem:[%s3 + $0x8] sm:$0xf]
    %v925 = vld [vmem:[%s3 + $0xc] sm:$0xf]
    %v926 = vld [vmem:[%s3 + $0x10] sm:$0xf]
    %v927 = vld [vmem:[%s3 + $0x14] sm:$0xf]
    %v928 = vld [vmem:[%s3 + $0x18] sm:$0xf]
    %v929 = vld [vmem:[%s3 + $0x1c] sm:$0xf]
    %v930 = vld [vmem:[%s3 + $0x20] sm:$0xf]
    %v931 = vld [vmem:[%s3 + $0x24] sm:$0xf]
    %v932 = vld [vmem:[%s3 + $0x28] sm:$0xf]
    %v933 = vld [vmem:[%s3 + $0x2c] sm:$0xf]
    %v934 = vld [vmem:[%s3 + $0x30] sm:$0xf]
    %v935 = vld [vmem:[%s3 + $0x34] sm:$0xf]
    %v936 = vld [vmem:[%s3 + $0x38] sm:$0xf]
    %v937 = vld [vmem:[%s3 + $0x3c] sm:$0xf]
    %v938 = vld [vmem:[%s4] sm:$0x1]
    %v940 = vlaneseq
    %v941 = vshrl.u32 %v940, 7
    %v942 = vsub.s32 0, %v941
    %v943 = vrot.slane %v938, %v942
    %v961 = vunpack.c.l.b16 %v922
    %v962 = vunpack.c.l.b16 %v923
    %v963 = vunpack.c.l.b16 %v924
    %v964 = vunpack.c.l.b16 %v925
    %v965 = vunpack.c.l.b16 %v926
    %v966 = vunpack.c.l.b16 %v927
    %v967 = vunpack.c.l.b16 %v928
    %v968 = vunpack.c.l.b16 %v929
    %v969 = vunpack.c.l.b16 %v930
    %v970 = vunpack.c.l.b16 %v931
    %v971 = vunpack.c.l.b16 %v932
    %v972 = vunpack.c.l.b16 %v933
    %v973 = vunpack.c.l.b16 %v934
    %v974 = vunpack.c.l.b16 %v935
    %v975 = vunpack.c.l.b16 %v936
    %v976 = vunpack.c.l.b16 %v937
    %v977 = vpack.c.b16 %v962, %v961
    %v978 = vpack.c.b16 %v964, %v963
    %v979 = vpack.c.b16 %v966, %v965
    %v980 = vpack.c.b16 %v968, %v967
    %v981 = vpack.c.b16 %v970, %v969
    %v982 = vpack.c.b16 %v972, %v971
    %v983 = vpack.c.b16 %v974, %v973
    %v984 = vpack.c.b16 %v976, %v975
    %993 = vmatprep.subr.bf16.mxu0 0
    %994 = vmatpush1.bf16.msra.mxu0 %v977
    %995 = vmatprep.subr.bf16.mxu0 0
    %996 = vmatpush1.bf16.msra.mxu0 %v978
    %997 = vmatprep.subr.bf16.mxu0 0
    %998 = vmatpush1.bf16.msra.mxu0 %v979
    %999 = vmatprep.subr.bf16.mxu0 0
    %1000 = vmatpush1.bf16.msra.mxu0 %v980
    %1001 = vmatprep.subr.bf16.mxu0 0
    %1002 = vmatpush1.bf16.msra.mxu0 %v981
    %1003 = vmatprep.subr.bf16.mxu0 0
    %1004 = vmatpush1.bf16.msra.mxu0 %v982
    %1005 = vmatprep.subr.bf16.mxu0 0
    %1006 = vmatpush1.bf16.msra.mxu0 %v983
    %1007 = vmatprep.subr.bf16.mxu0 0
    %1008 = vmatpush1.bf16.msra.mxu0 %v984
    %1009 = vmatprep.subr.bf16.mxu0 0
    %1010 = vmatpush1.bf16.msra.mxu0 0
    %1011 = vmatprep.subr.bf16.mxu0 0
    %1012 = vmatpush1.bf16.msra.mxu0 0
    %1013 = vmatprep.subr.bf16.mxu0 0
    %1014 = vmatpush1.bf16.msra.mxu0 0
    %1015 = vmatprep.subr.bf16.mxu0 0
    %1016 = vmatpush1.bf16.msra.mxu0 0
    %1017 = vmatprep.subr.bf16.mxu0 0
    %1018 = vmatpush1.bf16.msra.mxu0 0
    %1019 = vmatprep.subr.bf16.mxu0 0
    %1020 = vmatpush1.bf16.msra.mxu0 0
    %1021 = vmatprep.subr.bf16.mxu0 0
    %1022 = vmatpush1.bf16.msra.mxu0 0
    %1023 = vmatprep.subr.bf16.mxu0 0
    %1024 = vmatpush1.bf16.msra.mxu0 0
    %1025 = vmatprep.mubr.bf16.mxu0 0
    %1026 = vmatmul.mubr.bf16.gmra.mrb[0].mxu0 %v921
    %v1027 = vpop.f32.mrb[0].mxu0
    %v1028 = vadd.f32 %v943, %v1027
    %v1029 = vpop.f32.mrb[0].mxu0
    %v1030 = vpop.f32.mrb[0].mxu0
    %v1031 = vadd.f32 %v943, %v1030
    %v1032 = vpop.f32.mrb[0].mxu0
    %1033 = vdwg.mxu0
    %1034 = vst [vmem:[#allocation5] sm:$0xff] %v1028
    %1035 = vst [vmem:[#allocation5 + $0x8] sm:$0xff] %v1031
    // Predicated region
    $region26: #{_mlp_forward.1} parent=1 // pred_check
      _
    $region27: #{_mlp_forward.1} parent=1 // pred_check_branch
      %1037 = sbr.rel (0) target = $region29
    $region28: #{_mlp_forward.1} parent=1 // pred_region
      %s1039 = ssub.s32 256, 32
      %1040 = vsyncadd [#allocation4], %s1039
      %s1041 = sshll.u32 [#allocation5], 4
      %s1042 = int_to_ptr.vmem [resolvable:$true] %s1041
      %1047 = dma.vmem_to_hbm [thread:$0]  %s1042, 32, %s5, [#allocation4], 32, 32, 2
    $region29: #{_mlp_forward.1} parent=1 // pred_fallthru
      _
    // Predicated region
    $region30: #{_mlp_forward.1} parent=1 // pred_check
      _
    $region31: #{_mlp_forward.1} parent=1 // pred_check_branch
      %1049 = sbr.rel (0) target = $region33
    $region32: #{_mlp_forward.1} parent=1 // pred_region
      %1050 = dma.done [#allocation4], 256
    $region33: #{_mlp_forward.1} parent=1 // pred_fallthru
      _
    %1051 = vsyncpa [#allocation3], 1
    %1052 = vsyncpa [#allocation4], 1

</llo_original>
